<compile_context>
chip_gen: v6e
topology: v6e:2x2x1
jax: 0.10.0
libtpu: 0.0.40
codegen_flags: <defaults>
</compile_context>

<pallas_src>
import jax
import jax.numpy as jnp
from jax import lax
from jax.experimental import pallas as pl
from jax.experimental.pallas import tpu as pltpu

EPS = 1e-5
_MIB = 1024 * 1024


def _round_up(a, m):
    return ((a + m - 1) // m) * m


def _resident_spec(block_shape):
    """Constant-index (VMEM-resident) block; single-buffered when supported."""
    index_map = lambda i: (0,) * len(block_shape)
    try:
        return pl.BlockSpec(block_shape, index_map, pipeline_mode=pl.Buffered(1))
    except TypeError:  # older BlockSpec without pipeline_mode kwarg
        return pl.BlockSpec(block_shape, index_map)


def _vmem_plan(B, F, S, x_dt, s_dt, w_dt, o_dt, requested_tb):
    """Pick the batch tile and scoped-VMEM limit from the chip's VMEM capacity."""
    isz = lambda dt: jnp.dtype(dt).itemsize
    resident = S * 2 * F * isz(w_dt) + 2 * F * 4                 # 1-buffered weight + bias
    per_row = (2 * (F * isz(x_dt) + S * isz(s_dt) + F * isz(o_dt))  # dbl-buffered x/s/out
               + 12 * F * 4)                                     # live f32 intermediates
    try:
        vmem_cap = pltpu.get_tpu_info().vmem_capacity_bytes      # 128 MiB v5e/v6e, 64 MiB v7x
    except Exception:
        vmem_cap = 64 * _MIB
    budget = int(vmem_cap * 0.6)                                 # headroom for compiler scratch

    tb = 8
    if budget > resident:
        tb = max(8, ((budget - resident) // per_row) // 8 * 8)
    tb = min(tb, 1024)
    if requested_tb is not None:
        tb = min(tb, max(8, _round_up(requested_tb, 8)))
    b8 = _round_up(B, 8)
    tb = min(tb, b8)
    if b8 >= 16:  # expose >=2 grid steps so v7x can shard batch over both TensorCores
        tb = min(tb, _round_up(pl.cdiv(b8, 2), 8))
    tb = max(8, tb)

    need = resident + tb * per_row + 2 * _MIB
    vmem_limit = int(min(vmem_cap, max(2 * need, 32 * _MIB)))
    return tb, vmem_limit


def adain_kernel(x_ref, s_ref, w_ref, b_ref, o_ref):
    F = o_ref.shape[-1]
    # fc(s) on the MXU: single (S, 2F) pass, f32 accumulation.  The fc bias and
    # the "+1" of (1 + gamma) were folded into b on the host, so h[:, :F] is
    # already the multiplicative scale.  F % 128 == 0 keeps the slice lane-aligned.
    h = jnp.dot(s_ref[...], w_ref[...],
                preferred_element_type=jnp.float32) + b_ref[...]
    scale = h[:, :F]
    beta = h[:, F:]

    # InstanceNorm1d(affine=False) on x.view(B, 1, F): per-row norm over the
    # feature axis, biased variance, eps inside the rsqrt.
    x = x_ref[...].astype(jnp.float32)
    mean = jnp.mean(x, axis=1, keepdims=True)
    xc = x - mean
    var = jnp.mean(xc * xc, axis=1, keepdims=True)
    xn = xc * lax.rsqrt(var + EPS)

    o_ref[...] = (scale * xn + beta).astype(o_ref.dtype)


def adain_forward(x, s, w, bias, *, tb=None):
    """Fused AdaIN.

    x:    (B, F)   features to normalize
    s:    (B, S)   style vector
    w:    (2F, S)  nn.Linear(style_dim, 2*num_features) weight (PyTorch layout)
    bias: (2F,)    nn.Linear bias
    returns (B, F) = (1 + gamma) * InstanceNorm1d(x) + beta
    """
    B, F = x.shape
    S = s.shape[1]
    assert w.shape == (2 * F, S) and bias.shape == (2 * F,)

    # One-time host prep: fused (S, 2F) weight slab; fold fc bias and the "+1"
    # of (1 + gamma) into a single f32 bias row.
    w_fused = jnp.asarray(w).T                       # (S, 2F)
    b = jnp.asarray(bias, jnp.float32)
    b = b.at[:F].add(1.0)
    b = b.reshape(1, 2 * F)
    # TODO(synk): on v7x the weight slab could be stored in bf16 (f32 accumulation
    # kept) to halve its resident VMEM footprint; deliberate precision change,
    # so not done by default.

    tb, vmem_limit = _vmem_plan(B, F, S, x.dtype, s.dtype, w_fused.dtype, x.dtype, tb)
    grid = (pl.cdiv(B, tb),)   # ragged last block: reads clipped, stores masked

    isz = lambda a: jnp.dtype(a.dtype).itemsize
    cost = pl.CostEstimate(
        flops=2 * B * S * (2 * F) + 8 * B * F,
        transcendentals=B,                          # one rsqrt per row
        bytes_accessed=(x.size * isz(x) + s.size * isz(s)
                        + w_fused.size * isz(w_fused) + b.size * 4
                        + B * F * isz(x)),
    )

    return pl.pallas_call(
        adain_kernel,
        out_shape=jax.ShapeDtypeStruct((B, F), x.dtype),
        grid_spec=pltpu.PrefetchScalarGridSpec(
            num_scalar_prefetch=0,
            grid=grid,
            in_specs=[
                pl.BlockSpec((tb, F), lambda i: (i, 0)),   # x tile
                pl.BlockSpec((tb, S), lambda i: (i, 0)),   # s tile
                _resident_spec((S, 2 * F)),                # fc weight (resident, 1-buffered)
                _resident_spec((1, 2 * F)),                # folded bias (resident, 1-buffered)
            ],
            out_specs=pl.BlockSpec((tb, F), lambda i: (i, 0)),
        ),
        compiler_params=pltpu.CompilerParams(
            dimension_semantics=("parallel",),
            vmem_limit_bytes=vmem_limit),
        cost_estimate=cost,
    )(x, s, w_fused, b)


def adain_reference(x, s, w, bias):
    """w: (2F, S) PyTorch Linear layout, bias: (2F,)."""
    h = s @ w.T + bias[None, :]
    F = x.shape[1]
    gamma, beta = h[:, :F], h[:, F:]
    mean = x.mean(axis=1, keepdims=True)
    var = ((x - mean) ** 2).mean(axis=1, keepdims=True)
    xn = (x - mean) / jnp.sqrt(var + EPS)
    return (1.0 + gamma) * xn + beta


if __name__ == "__main__":
    # In MLP_DIF_FUSION, AdaIN1(opt.resSize, opt.resSize): style_dim == num_features.
    # B deliberately not a multiple of the batch tile to exercise the ragged
    # last grid block (clipped reads / masked stores); tb=16 -> 2 grid tiles.
    B = 30
    resSize = 128
    style_dim = num_features = resSize

    key = jax.random.PRNGKey(0)
    kx, ks, kw, kb = jax.random.split(key, 4)

    x = jax.random.normal(kx, (B, num_features), dtype=jnp.float32)
    s = jax.random.normal(ks, (B, style_dim), dtype=jnp.float32)

    # nn.Linear(style_dim, 2*num_features) params (weights_init-style scale).
    w = 0.02 * jax.random.normal(kw, (2 * num_features, style_dim), dtype=jnp.float32)
    bias = 0.02 * jax.random.normal(kb, (2 * num_features,), dtype=jnp.float32)

    out = adain_forward(x, s, w, bias, tb=16)
    out = jax.block_until_ready(out)

    ref = adain_reference(x, s, w, bias)
    assert out.shape == (B, num_features)
    assert jnp.allclose(out, ref, atol=1e-4, rtol=1e-4)

    print("KERNEL_OK")
</pallas_src>

<mosaic_0001>
module attributes {stable_mosaic.version = 11 : i64} {
  func.func @adain_kernel(%arg0: i32, %arg1: memref<16x128xf32, #tpu.memory_space<vmem>>, %arg2: memref<16x128xf32, #tpu.memory_space<vmem>>, %arg3: memref<128x256xf32, #tpu.memory_space<vmem>>, %arg4: memref<1x256xf32, #tpu.memory_space<vmem>>, %arg5: memref<16x128xf32, #tpu.memory_space<vmem>>) attributes {dimension_semantics = [#tpu.dimension_semantics<parallel>], iteration_bounds = array<i64: 2>, scalar_prefetch = 0 : i64, scratch_operands = 0 : i64, tpu.core_type = #tpu.core_type<tc>, window_params = [{transform_indices = @transform_0, window_bounds = array<i64: 16, 128>}, {transform_indices = @transform_1, window_bounds = array<i64: 16, 128>}, {pipeline_mode = #tpu.pipeline_mode<synchronous>, transform_indices = @transform_2, window_bounds = array<i64: 128, 256>}, {pipeline_mode = #tpu.pipeline_mode<synchronous>, transform_indices = @transform_3, window_bounds = array<i64: 1, 256>}, {transform_indices = @transform_4, window_bounds = array<i64: 16, 128>}]} {
    %c0 = arith.constant 0 : index
    %c0_0 = arith.constant 0 : index
    %0 = vector.load %arg2[%c0, %c0_0] : memref<16x128xf32, #tpu.memory_space<vmem>>, vector<16x128xf32>
    %c0_1 = arith.constant 0 : index
    %c0_2 = arith.constant 0 : index
    %1 = vector.load %arg3[%c0_1, %c0_2] : memref<128x256xf32, #tpu.memory_space<vmem>>, vector<128x256xf32>
    %cst = arith.constant dense<0.000000e+00> : vector<16x256xf32>
    %2 = tpu.matmul %0, %1, %cst {dimension_numbers = #tpu.dot_dimension_numbers<[1], [0], [0], [1], [0, 0, 1, 1], [], []>} : vector<16x128xf32>, vector<128x256xf32>, vector<16x256xf32> -> vector<16x256xf32>
    %c0_3 = arith.constant 0 : index
    %c0_4 = arith.constant 0 : index
    %3 = vector.load %arg4[%c0_3, %c0_4] : memref<1x256xf32, #tpu.memory_space<vmem>>, vector<1x256xf32>
    %4 = vector.broadcast %3 : vector<1x256xf32> to vector<16x256xf32>
    %5 = arith.addf %2, %4 : vector<16x256xf32>
    %6 = vector.extract_strided_slice %5 {offsets = [0, 0], sizes = [16, 128], strides = [1, 1]} : vector<16x256xf32> to vector<16x128xf32>
    %7 = vector.extract_strided_slice %5 {offsets = [0, 128], sizes = [16, 128], strides = [1, 1]} : vector<16x256xf32> to vector<16x128xf32>
    %c0_5 = arith.constant 0 : index
    %c0_6 = arith.constant 0 : index
    %8 = vector.load %arg1[%c0_5, %c0_6] : memref<16x128xf32, #tpu.memory_space<vmem>>, vector<16x128xf32>
    %cst_7 = arith.constant dense<0.000000e+00> : vector<16xf32>
    %9 = vector.multi_reduction <add>, %8, %cst_7 [1] : vector<16x128xf32> to vector<16xf32>
    %10 = vector.shape_cast %9 : vector<16xf32> to vector<16x1xf32>
    %cst_8 = arith.constant 1.280000e+02 : f32
    %11 = vector.broadcast %cst_8 : f32 to vector<16x1xf32>
    %12 = arith.divf %10, %11 : vector<16x1xf32>
    %13 = vector.broadcast %12 : vector<16x1xf32> to vector<16x128xf32>
    %14 = arith.subf %8, %13 : vector<16x128xf32>
    %15 = arith.mulf %14, %14 : vector<16x128xf32>
    %cst_9 = arith.constant dense<0.000000e+00> : vector<16xf32>
    %16 = vector.multi_reduction <add>, %15, %cst_9 [1] : vector<16x128xf32> to vector<16xf32>
    %17 = vector.shape_cast %16 : vector<16xf32> to vector<16x1xf32>
    %cst_10 = arith.constant 1.280000e+02 : f32
    %18 = vector.broadcast %cst_10 : f32 to vector<16x1xf32>
    %19 = arith.divf %17, %18 : vector<16x1xf32>
    %cst_11 = arith.constant 9.99999974E-6 : f32
    %20 = vector.broadcast %cst_11 : f32 to vector<16x1xf32>
    %21 = arith.addf %19, %20 : vector<16x1xf32>
    %22 = math.rsqrt %21 : vector<16x1xf32>
    %23 = vector.broadcast %22 : vector<16x1xf32> to vector<16x128xf32>
    %24 = arith.mulf %14, %23 : vector<16x128xf32>
    %25 = arith.mulf %6, %24 : vector<16x128xf32>
    %26 = arith.addf %25, %7 : vector<16x128xf32>
    %c0_12 = arith.constant 0 : index
    %c0_13 = arith.constant 0 : index
    %27 = vector.load %arg5[%c0_12, %c0_13] : memref<16x128xf32, #tpu.memory_space<vmem>>, vector<16x128xf32>
    tpu.vector_store %arg5[%c0_12, %c0_13], %26 {strides = array<i32>} : memref<16x128xf32, #tpu.memory_space<vmem>>, vector<16x128xf32>,
    return
  }
  func.func @transform_0(%arg0: i32) -> (i32, i32) {
    %c0_i32 = arith.constant 0 : i32
    %c0_i32_0 = arith.constant 0 : i32
    return %arg0, %c0_i32 : i32, i32
  }
  func.func @transform_1(%arg0: i32) -> (i32, i32) {
    %c0_i32 = arith.constant 0 : i32
    %c0_i32_0 = arith.constant 0 : i32
    return %arg0, %c0_i32 : i32, i32
  }
  func.func @transform_2(%arg0: i32) -> (i32, i32) {
    %c0_i32 = arith.constant 0 : i32
    %c0_i32_0 = arith.constant 0 : i32
    %c0_i32_1 = arith.constant 0 : i32
    return %c0_i32, %c0_i32_0 : i32, i32
  }
  func.func @transform_3(%arg0: i32) -> (i32, i32) {
    %c0_i32 = arith.constant 0 : i32
    %c0_i32_0 = arith.constant 0 : i32
    %c0_i32_1 = arith.constant 0 : i32
    return %c0_i32, %c0_i32_0 : i32, i32
  }
  func.func @transform_4(%arg0: i32) -> (i32, i32) {
    %c0_i32 = arith.constant 0 : i32
    %c0_i32_0 = arith.constant 0 : i32
    return %arg0, %c0_i32 : i32, i32
  }
}

</mosaic_0001>

<llo_original>
// kernel: tpu_custom_call.1
$region0: #{tpu_custom_call.1}
  #allocation0 [shape = 'u32[]', space=smem, size = 0x4, offset = 0x4, fixed_abs, tag = 'smem constant byte address 0x4 - core index']
  #allocation1 [shape = 'u32[144,128]{1,0:T(1,128)}', space=vmem, size = 0x12000, scoped, tag = 'internal scratch']
  %s0 = inlined_call_operand.hbm [shape: f32[30,128], index: 0, kind: input, shape index: {}]
  %s1 = inlined_call_operand.hbm [shape: f32[30,128], index: 1, kind: input, shape index: {}]
  %s2 = inlined_call_operand.hbm [shape: f32[128,256], index: 2, kind: input, shape index: {}]
  %s3 = inlined_call_operand.vmem [shape: f32[1,256], index: 3, kind: input, shape index: {}]
  %s4 = inlined_call_operand.hbm [shape: f32[30,128], index: 4, kind: output, shape index: {}]
  %s5 = sld [smem:[#allocation0]]
  $region61: #{tpu_custom_call.1} parent=0
    _
  %s7 = ssub.s32 1, %s5
  %s8 = scalar_select 0, %s7, %s5
  $region1: #{tpu_custom_call.1} parent=0
    #allocation2 [shape = 'u8[16384]{0}', space=vmem, size = 0x4000, scoped, tag = 'input window, operand 0']
    #allocation3 [shape = 's32[2]{0}', space=sflag, size = 0x8, scoped, tag = 'scoped memory for tpu_custom_call.1']
    #allocation4 [shape = 's32[2]{0}', space=sflag, size = 0x8, scoped, tag = 'scoped memory for tpu_custom_call.1']
    #allocation5 [shape = 'u8[16384]{0}', space=vmem, size = 0x4000, scoped, tag = 'input window, operand 1']
    #allocation6 [shape = 's32[2]{0}', space=sflag, size = 0x8, scoped, tag = 'scoped memory for tpu_custom_call.1']
    #allocation7 [shape = 'u8[131072]{0}', space=vmem, size = 0x20000, scoped, tag = 'input window, operand 2, single buffered']
    #allocation8 [shape = 'u8[16384]{0}', space=vmem, size = 0x4000, scoped, tag = 'output window, operand 0']
    %9 = vsyncpa [#allocation3], 0
    %s10 = scalar_lea.sflag [#allocation3], 1
    %11 = vsyncpa %s10, 0
    %12 = vsyncpa [#allocation6], 0
    %s13 = scalar_lea.sflag [#allocation6], 1
    %14 = vsyncpa %s13, 0
    %15 = vsyncpa [#allocation4], 0
    %s16 = scalar_lea.sflag [#allocation4], 1
    %17 = vsyncpa %s16, 0
    loop: start=0, step=1, limit=4
    $region2: #{tpu_custom_call.1} parent=1 // loop_pre_header
      _
    $region3: #{tpu_custom_call.1} parent=1 // loop_header
      %s19 = sphi 0, %s23
      %p20 = scmp.ge.s32.totalorder %s19, 4
      %s29 = sphi 0, %s31
      %s32 = sphi 0, %s29
      %s33 = sphi 0, %s32
      %s49 = sphi 0, %s33
      %s55 = sphi 0, %s57
      %s58 = sphi 0, %s55
      %s59 = sphi 0, %s58
      %s75 = sphi 0, %s59
      %s79 = sphi 0, %s79
      %s81 = sphi 0, %s79
      %s82 = sphi 0, %s81
      %s96 = sphi 0, %s82
      %s100 = sphi 0, %s100
      %s102 = sphi 0, %s100
      %s103 = sphi 0, %s102
      %s117 = sphi 0, %s103
      %s123 = sphi 0, %s125
      %s126 = sphi 0, %s123
      %s127 = sphi 0, %s126
      %s143 = sphi 0, %s127
    $region4: #{tpu_custom_call.1} parent=1 // loop_header_branch
      %22 = sbr.rel (%p20) target = $region8
    $region5: #{tpu_custom_call.1} parent=1 // loop_body
      %s24 = ssub.s32 %s19, 1
      %s25 = ssub.s32 %s19, 2
      %s26 = sadd.s32 %s19, 1
      %s27 = ssub.s32 %s19, %s26
      %p28 = scmp.eq.s32.totalorder %s27, 0
      %s30 = sadd.s32 %s29, 1
      %s31 = scalar_select %p28, %s29, %s30
      %p34 = pneg %p28
      %p35 = scmp.eq.s32.totalorder %s19, 1
      %p36 = por %p34, %p35
      %p37 = scmp.ne.s32.totalorder %s29, %s32
      %p38 = scmp.eq.s32.totalorder %s19, 0
      %p39 = por %p37, %p38
      %p40 = scmp.ne.s32.totalorder %s29, %s32
      %p41 = scmp.eq.s32.totalorder %s24, 1
      %p42 = por %p40, %p41
      %p43 = scmp.ne.s32.totalorder %s32, %s33
      %p44 = scmp.eq.s32.totalorder %s24, 0
      %p45 = por %p43, %p44
      %p46 = scmp.ne.s32.totalorder %s32, %s33
      %p47 = scmp.eq.s32.totalorder %s25, 1
      %p48 = por %p46, %p47
      %p50 = scmp.ne.s32.totalorder %s33, %s49
      %p51 = scmp.eq.s32.totalorder %s25, 0
      %p52 = por %p50, %p51
      %s53 = ssub.s32 %s19, %s26
      %p54 = scmp.eq.s32.totalorder %s53, 0
      %s56 = sadd.s32 %s55, 1
      %s57 = scalar_select %p54, %s55, %s56
      %p60 = pneg %p54
      %p61 = scmp.eq.s32.totalorder %s19, 1
      %p62 = por %p60, %p61
      %p63 = scmp.ne.s32.totalorder %s55, %s58
      %p64 = scmp.eq.s32.totalorder %s19, 0
      %p65 = por %p63, %p64
      %p66 = scmp.ne.s32.totalorder %s55, %s58
      %p67 = scmp.eq.s32.totalorder %s24, 1
      %p68 = por %p66, %p67
      %p69 = scmp.ne.s32.totalorder %s58, %s59
      %p70 = scmp.eq.s32.totalorder %s24, 0
      %p71 = por %p69, %p70
      %p72 = scmp.ne.s32.totalorder %s58, %s59
      %p73 = scmp.eq.s32.totalorder %s25, 1
      %p74 = por %p72, %p73
      %p76 = scmp.ne.s32.totalorder %s59, %s75
      %p77 = scmp.eq.s32.totalorder %s25, 0
      %p78 = por %p76, %p77
      %s80 = sadd.s32 %s79, 1
      %p83 = scmp.eq.s32.totalorder %s19, 1
      %p84 = scmp.ne.s32.totalorder %s79, %s81
      %p85 = scmp.eq.s32.totalorder %s19, 0
      %p86 = por %p84, %p85
      %p87 = scmp.ne.s32.totalorder %s79, %s81
      %p88 = scmp.eq.s32.totalorder %s24, 1
      %p89 = por %p87, %p88
      %p90 = scmp.ne.s32.totalorder %s81, %s82
      %p91 = scmp.eq.s32.totalorder %s24, 0
      %p92 = por %p90, %p91
      %p93 = scmp.ne.s32.totalorder %s81, %s82
      %p94 = scmp.eq.s32.totalorder %s25, 1
      %p95 = por %p93, %p94
      %p97 = scmp.ne.s32.totalorder %s82, %s96
      %p98 = scmp.eq.s32.totalorder %s25, 0
      %p99 = por %p97, %p98
      %s101 = sadd.s32 %s100, 1
      %p104 = scmp.eq.s32.totalorder %s19, 1
      %p105 = scmp.ne.s32.totalorder %s100, %s102
      %p106 = scmp.eq.s32.totalorder %s19, 0
      %p107 = por %p105, %p106
      %p108 = scmp.ne.s32.totalorder %s100, %s102
      %p109 = scmp.eq.s32.totalorder %s24, 1
      %p110 = por %p108, %p109
      %p111 = scmp.ne.s32.totalorder %s102, %s103
      %p112 = scmp.eq.s32.totalorder %s24, 0
      %p113 = por %p111, %p112
      %p114 = scmp.ne.s32.totalorder %s102, %s103
      %p115 = scmp.eq.s32.totalorder %s25, 1
      %p116 = por %p114, %p115
      %p118 = scmp.ne.s32.totalorder %s103, %s117
      %p119 = scmp.eq.s32.totalorder %s25, 0
      %p120 = por %p118, %p119
      %s121 = ssub.s32 %s19, %s26
      %p122 = scmp.eq.s32.totalorder %s121, 0
      %s124 = sadd.s32 %s123, 1
      %s125 = scalar_select %p122, %s123, %s124
      %p128 = pneg %p122
      %p129 = scmp.eq.s32.totalorder %s19, 1
      %p130 = por %p128, %p129
      %p131 = scmp.ne.s32.totalorder %s123, %s126
      %p132 = scmp.eq.s32.totalorder %s19, 0
      %p133 = por %p131, %p132
      %p134 = scmp.ne.s32.totalorder %s123, %s126
      %p135 = scmp.eq.s32.totalorder %s24, 1
      %p136 = por %p134, %p135
      %p137 = scmp.ne.s32.totalorder %s126, %s127
      %p138 = scmp.eq.s32.totalorder %s24, 0
      %p139 = por %p137, %p138
      %p140 = scmp.ne.s32.totalorder %s126, %s127
      %p141 = scmp.eq.s32.totalorder %s25, 1
      %p142 = por %p140, %p141
      %p144 = scmp.ne.s32.totalorder %s127, %s143
      %p145 = scmp.eq.s32.totalorder %s25, 0
      %p146 = por %p144, %p145
      %p147 = scmp.le.s32.totalorder 1, %s19
      %p148 = scmp.lt.s32.totalorder %s19, 3
      %p149 = pnand %p147, %p148
      %p150 = pneg %p149
      // Predicated region
      $region9: #{tpu_custom_call.1} parent=5 // pred_check
        _
      $region10: #{tpu_custom_call.1} parent=5 // pred_check_branch
        %152 = sbr.rel (%p149) target = $region12
      $region11: #{tpu_custom_call.1} parent=5 // pred_region
        %s153 = ssub.s32 %s19, 1
        // Predicated region
        $region13: #{tpu_custom_call.1} parent=11 // pred_check
          %p154 = pneg %p92
        $region14: #{tpu_custom_call.1} parent=11 // pred_check_branch
          %156 = sbr.rel (%p154) target = $region16
        $region15: #{tpu_custom_call.1} parent=11 // pred_region
          %s158 = ssub.s32 4096, 4096
          %159 = vsyncadd [#allocation6], %s158
          %s160 = sshll.u32 [#allocation7], 4
          %s161 = int_to_ptr.vmem [resolvable:$true] %s160
          %166 = dma.hbm_to_vmem [thread:$0]  %s2, 4096, %s161, [#allocation6], 256, 256, 16
        $region16: #{tpu_custom_call.1} parent=11 // pred_fallthru
          _
        // Predicated region
        $region17: #{tpu_custom_call.1} parent=11 // pred_check
          %p167 = pneg %p113
        $region18: #{tpu_custom_call.1} parent=11 // pred_check_branch
          %169 = sbr.rel (%p167) target = $region20
        $region19: #{tpu_custom_call.1} parent=11 // pred_region
          _
        $region20: #{tpu_custom_call.1} parent=11 // pred_fallthru
          _
      $region12: #{tpu_custom_call.1} parent=5 // pred_fallthru
        _
      %p170 = scmp.lt.s32.totalorder %s19, 2
      // Predicated region
      $region21: #{tpu_custom_call.1} parent=5 // pred_check
        %p171 = pneg %p170
      $region22: #{tpu_custom_call.1} parent=5 // pred_check_branch
        %173 = sbr.rel (%p171) target = $region24
      $region23: #{tpu_custom_call.1} parent=5 // pred_region
        // Predicated region
        $region25: #{tpu_custom_call.1} parent=23 // pred_check
          %p174 = pneg %p39
        $region26: #{tpu_custom_call.1} parent=23 // pred_check_branch
          %176 = sbr.rel (%p174) target = $region28
        $region27: #{tpu_custom_call.1} parent=23 // pred_region
          %s177 = sand.u32 %s29, 1
          %s178 = scalar_lea.sflag [#allocation3], %s177
          %s179 = sand.u32 %s29, 1
          %s180 = smul.addr %s179, 16
          %s181 = scalar_lea.vmem [#allocation2], %s180
          %s182 = smul.u32 2, %s19
          %s184 = ssub.s32 256, 256
          %185 = vsyncadd %s178, %s184
          %s186 = smul.addr %s182, 128
          %s187 = scalar_lea.hbm %s0, %s186
          %s188 = sshll.u32 %s181, 4
          %s189 = int_to_ptr.vmem [resolvable:$true] %s188
          %194 = dma.hbm_to_vmem [thread:$0]  %s187, 256, %s189, %s178, 128, 128, 8
        $region28: #{tpu_custom_call.1} parent=23 // pred_fallthru
          _
        // Predicated region
        $region29: #{tpu_custom_call.1} parent=23 // pred_check
          %p195 = pneg %p65
        $region30: #{tpu_custom_call.1} parent=23 // pred_check_branch
          %197 = sbr.rel (%p195) target = $region32
        $region31: #{tpu_custom_call.1} parent=23 // pred_region
          %s198 = sand.u32 %s19, 1
          %s199 = scalar_lea.sflag [#allocation6], %s198
          %s200 = sand.u32 %s55, 1
          %s201 = smul.addr %s200, 16
          %s202 = scalar_lea.vmem [#allocation5], %s201
          %s203 = smul.u32 2, %s19
          %s205 = ssub.s32 256, 256
          %206 = vsyncadd %s199, %s205
          %s207 = smul.addr %s203, 128
          %s208 = scalar_lea.hbm %s1, %s207
          %s209 = sshll.u32 %s202, 4
          %s210 = int_to_ptr.vmem [resolvable:$true] %s209
          %215 = dma.hbm_to_vmem [thread:$0]  %s208, 256, %s210, %s199, 128, 128, 8
        $region32: #{tpu_custom_call.1} parent=23 // pred_fallthru
          _
      $region24: #{tpu_custom_call.1} parent=5 // pred_fallthru
        _
      %p216 = scmp.le.s32.totalorder 1, %s19
      %p217 = scmp.lt.s32.totalorder %s19, 3
      %p218 = pnand %p216, %p217
      %p219 = pneg %p218
      // Predicated region
      $region33: #{tpu_custom_call.1} parent=5 // pred_check
        _
      $region34: #{tpu_custom_call.1} parent=5 // pred_check_branch
        %221 = sbr.rel (%p218) target = $region36
      $region35: #{tpu_custom_call.1} parent=5 // pred_region
        %s222 = ssub.s32 %s19, 1
        %s223 = sand.u32 %s32, 1
        %s224 = scalar_lea.sflag [#allocation3], %s223
        %s225 = sand.u32 %s32, 1
        %s226 = smul.addr %s225, 16
        %s227 = scalar_lea.vmem [#allocation2], %s226
        // Predicated region
        $region37: #{tpu_custom_call.1} parent=35 // pred_check
          %p228 = pneg %p45
        $region38: #{tpu_custom_call.1} parent=35 // pred_check_branch
          %230 = sbr.rel (%p228) target = $region40
        $region39: #{tpu_custom_call.1} parent=35 // pred_region
          %231 = dma.done %s224, 256
        $region40: #{tpu_custom_call.1} parent=35 // pred_fallthru
          _
        %s232 = sand.u32 %s24, 1
        %s233 = scalar_lea.sflag [#allocation6], %s232
        %s234 = sand.u32 %s58, 1
        %s235 = smul.addr %s234, 16
        %s236 = scalar_lea.vmem [#allocation5], %s235
        // Predicated region
        $region41: #{tpu_custom_call.1} parent=35 // pred_check
          %p237 = pneg %p71
        $region42: #{tpu_custom_call.1} parent=35 // pred_check_branch
          %239 = sbr.rel (%p237) target = $region44
        $region43: #{tpu_custom_call.1} parent=35 // pred_region
          %240 = dma.done %s233, 256
        $region44: #{tpu_custom_call.1} parent=35 // pred_fallthru
          _
        // Predicated region
        $region45: #{tpu_custom_call.1} parent=35 // pred_check
          %p241 = pneg %p92
        $region46: #{tpu_custom_call.1} parent=35 // pred_check_branch
          %243 = sbr.rel (%p241) target = $region48
        $region47: #{tpu_custom_call.1} parent=35 // pred_region
          %244 = dma.done [#allocation6], 4096
        $region48: #{tpu_custom_call.1} parent=35 // pred_fallthru
          _
        %s245 = sand.u32 %s32, 1
        %s246 = scalar_lea.sflag [#allocation3], %s245
        %s247 = sand.u32 %s32, 1
        %s248 = smul.addr %s247, 16
        %s249 = scalar_lea.vmem [#allocation2], %s248
        %p250 = pneg %p45
        %p251 = pneg %p42
        %s252 = sand.u32 %s24, 1
        %s253 = scalar_lea.sflag [#allocation6], %s252
        %s254 = sand.u32 %s58, 1
        %s255 = smul.addr %s254, 16
        %s256 = scalar_lea.vmem [#allocation5], %s255
        %p257 = pneg %p71
        %p258 = pneg %p68
        %p259 = pneg %p92
        %p260 = pneg %p89
        %p261 = pneg %p113
        %p262 = pneg %p110
        %p263 = pneg %p139
        %p264 = pneg %p136
        %s265 = sand.u32 %s126, 1
        %s266 = scalar_lea.sflag [#allocation4], %s265
        %s267 = sand.u32 %s126, 1
        %s268 = smul.addr %s267, 16
        %s269 = scalar_lea.vmem [#allocation8], %s268
        %s270 = smul.u32 2, %s24
        %s271 = smul.u32 2, %s24
        %s272 = smul.u32 2, %s24
        %v273 = vld [vmem:[%s236] sm:$0xff]
        %v274 = vld [vmem:[%s236 + $0x8] sm:$0xff]
        %v275 = vld [vmem:[#allocation7] sm:$0xff]
        %v276 = vld [vmem:[#allocation7 + $0x8] sm:$0xff]
        %v277 = vld [vmem:[#allocation7 + $0x10] sm:$0xff]
        %v278 = vld [vmem:[#allocation7 + $0x18] sm:$0xff]
        %v279 = vld [vmem:[#allocation7 + $0x20] sm:$0xff]
        %v280 = vld [vmem:[#allocation7 + $0x28] sm:$0xff]
        %v281 = vld [vmem:[#allocation7 + $0x30] sm:$0xff]
        %v282 = vld [vmem:[#allocation7 + $0x38] sm:$0xff]
        %v283 = vld [vmem:[#allocation7 + $0x40] sm:$0xff]
        %v284 = vld [vmem:[#allocation7 + $0x48] sm:$0xff]
        %v285 = vld [vmem:[#allocation7 + $0x50] sm:$0xff]
        %v286 = vld [vmem:[#allocation7 + $0x58] sm:$0xff]
        %v287 = vld [vmem:[#allocation7 + $0x60] sm:$0xff]
        %v288 = vld [vmem:[#allocation7 + $0x68] sm:$0xff]
        %v289 = vld [vmem:[#allocation7 + $0x70] sm:$0xff]
        %v290 = vld [vmem:[#allocation7 + $0x78] sm:$0xff]
        %v291 = vld [vmem:[#allocation7 + $0x80] sm:$0xff]
        %v292 = vld [vmem:[#allocation7 + $0x88] sm:$0xff]
        %v293 = vld [vmem:[#allocation7 + $0x90] sm:$0xff]
        %v294 = vld [vmem:[#allocation7 + $0x98] sm:$0xff]
        %v295 = vld [vmem:[#allocation7 + $0xa0] sm:$0xff]
        %v296 = vld [vmem:[#allocation7 + $0xa8] sm:$0xff]
        %v297 = vld [vmem:[#allocation7 + $0xb0] sm:$0xff]
        %v298 = vld [vmem:[#allocation7 + $0xb8] sm:$0xff]
        %v299 = vld [vmem:[#allocation7 + $0xc0] sm:$0xff]
        %v300 = vld [vmem:[#allocation7 + $0xc8] sm:$0xff]
        %v301 = vld [vmem:[#allocation7 + $0xd0] sm:$0xff]
        %v302 = vld [vmem:[#allocation7 + $0xd8] sm:$0xff]
        %v303 = vld [vmem:[#allocation7 + $0xe0] sm:$0xff]
        %v304 = vld [vmem:[#allocation7 + $0xe8] sm:$0xff]
        %v305 = vld [vmem:[#allocation7 + $0xf0] sm:$0xff]
        %v306 = vld [vmem:[#allocation7 + $0xf8] sm:$0xff]
        %v307 = vld [vmem:[%s3] sm:$0x3]
        %v309 = vlaneseq
        %v310 = vshrl.u32 %v309, 7
        %v311 = vsub.s32 0, %v310
        %v312 = vrot.slane %v307, %v311
        %v313 = vlaneseq
        %v314 = vshrl.u32 %v313, 7
        %v315 = vsub.s32 1, %v314
        %v316 = vrot.slane %v307, %v315
        %319 = vmatprep.subr.mxu0 %v306
        %320 = vmatpush1.msra.mxu0 %v305
        %321 = vmatprep.subr.mxu0 %v304
        %322 = vmatpush1.msra.mxu0 %v303
        %323 = vmatprep.subr.mxu0 %v302
        %324 = vmatpush1.msra.mxu0 %v301
        %325 = vmatprep.subr.mxu0 %v300
        %326 = vmatpush1.msra.mxu0 %v299
        %327 = vmatprep.subr.mxu0 %v298
        %328 = vmatpush1.msra.mxu0 %v297
        %329 = vmatprep.subr.mxu0 %v296
        %330 = vmatpush1.msra.mxu0 %v295
        %331 = vmatprep.subr.mxu0 %v294
        %332 = vmatpush1.msra.mxu0 %v293
        %333 = vmatprep.subr.mxu0 %v292
        %334 = vmatpush1.msra.mxu0 %v291
        %335 = vmatprep.subr.mxu0 %v290
        %336 = vmatpush1.msra.mxu0 %v289
        %337 = vmatprep.subr.mxu0 %v288
        %338 = vmatpush1.msra.mxu0 %v287
        %339 = vmatprep.subr.mxu0 %v286
        %340 = vmatpush1.msra.mxu0 %v285
        %341 = vmatprep.subr.mxu0 %v284
        %342 = vmatpush1.msra.mxu0 %v283
        %343 = vmatprep.subr.mxu0 %v282
        %344 = vmatpush1.msra.mxu0 %v281
        %345 = vmatprep.subr.mxu0 %v280
        %346 = vmatpush1.msra.mxu0 %v279
        %347 = vmatprep.subr.mxu0 %v278
        %348 = vmatpush1.msra.mxu0 %v277
        %349 = vmatprep.subr.mxu0 %v276
        %350 = vmatpush1.msra.mxu0 %v275
        %351 = vmatprep.subr.mxu0 0.0
        %352 = vmatpush2.msra.mxu0 0.0
        %353 = vmatprep.subr.mxu0 0.0
        %354 = vmatpush2.msra.mxu0 0.0
        %355 = vmatprep.subr.mxu0 0.0
        %356 = vmatpush2.msra.mxu0 0.0
        %357 = vmatprep.subr.mxu0 0.0
        %358 = vmatpush2.msra.mxu0 0.0
        %359 = vmatprep.subr.mxu0 0.0
        %360 = vmatpush2.msra.mxu0 0.0
        %361 = vmatprep.subr.mxu0 0.0
        %362 = vmatpush2.msra.mxu0 0.0
        %363 = vmatprep.subr.mxu0 0.0
        %364 = vmatpush2.msra.mxu0 0.0
        %365 = vmatprep.subr.mxu0 0.0
        %366 = vmatpush2.msra.mxu0 0.0
        %367 = vmatprep.subr.mxu0 0.0
        %368 = vmatpush2.msra.mxu0 0.0
        %369 = vmatprep.subr.mxu0 0.0
        %370 = vmatpush2.msra.mxu0 0.0
        %371 = vmatprep.subr.mxu0 0.0
        %372 = vmatpush2.msra.mxu0 0.0
        %373 = vmatprep.subr.mxu0 0.0
        %374 = vmatpush2.msra.mxu0 0.0
        %375 = vmatprep.subr.mxu0 0.0
        %376 = vmatpush2.msra.mxu0 0.0
        %377 = vmatprep.subr.mxu0 0.0
        %378 = vmatpush2.msra.mxu0 0.0
        %379 = vmatprep.subr.mxu0 0.0
        %380 = vmatpush2.msra.mxu0 0.0
        %381 = vmatprep.subr.mxu0 0.0
        %382 = vmatpush2.msra.mxu0 0.0
        %383 = vmatprep.mubr.f32.mxu0 0.0
        %384 = vmatmul.mubr.f32.gmra.mxu0 %v273
        %v385 = vpop.f32.mrf.mxu0
        %v386 = vadd.f32 %v312, %v385
        %v387 = vpop.f32.mrf.mxu0
        %v388 = vadd.f32 %v316, %v387
        %389 = vmatprep.mubr.f32.mxu0 0.0
        %390 = vmatmul.mubr.f32.gmra.mxu0 %v274
        %v391 = vpop.f32.mrf.mxu0
        %v392 = vadd.f32 %v312, %v391
        %v393 = vpop.f32.mrf.mxu0
        %v394 = vadd.f32 %v316, %v393
        %395 = vdwg.mxu0
        %v396 = vld [vmem:[%s227] sm:$0xff]
        %v397 = vld [vmem:[%s227 + $0x8] sm:$0xff]
        %398 = vadd.xlane.f32.xlu0 %v396
        %v399 = vpop.xlane.xlu0 %398
        %400 = vadd.xlane.f32.xlu0 %v397
        %v401 = vpop.xlane.xlu0 %400
        %v402 = vrcp.pop 128.0
        %v403 = vmul.f32 %v399, %v402
        %v404 = vmul.f32 %v401, %v402
        %v405 = vsub.f32 %v396, %v403
        %v406 = vsub.f32 %v397, %v404
        %v407 = vmul.f32 %v405, %v405
        %v408 = vmul.f32 %v406, %v406
        %409 = vadd.xlane.f32.xlu0 %v407
        %v410 = vpop.xlane.xlu0 %409
        %411 = vadd.xlane.f32.xlu0 %v408
        %v412 = vpop.xlane.xlu0 %411
        %v413 = vmul.f32 %v410, %v402
        %v414 = vmul.f32 %v412, %v402
        %v415 = vadd.f32 %v413, 1e-05
        %v416 = vadd.f32 %v414, 1e-05
        %v417 = vrsqrt.pop %v415
        %v418 = vrsqrt.pop %v416
        %v419 = vmul.f32 %v405, %v417
        %v420 = vmul.f32 %v406, %v418
        %v421 = vmul.f32 %v386, %v419
        %v422 = vmul.f32 %v392, %v420
        %v423 = vadd.f32 %v421, %v388
        %v424 = vadd.f32 %v422, %v394
        %425 = vst [vmem:[%s269] sm:$0xff] %v423
        %426 = vst [vmem:[%s269 + $0x8] sm:$0xff] %v424
        %s427 = sand.u32 %s126, 1
        %s428 = scalar_lea.sflag [#allocation4], %s427
        %s429 = sand.u32 %s126, 1
        %s430 = smul.addr %s429, 16
        %s431 = scalar_lea.vmem [#allocation8], %s430
        // Predicated region
        $region49: #{tpu_custom_call.1} parent=35 // pred_check
          %p432 = pneg %p136
        $region50: #{tpu_custom_call.1} parent=35 // pred_check_branch
          %434 = sbr.rel (%p432) target = $region52
        $region51: #{tpu_custom_call.1} parent=35 // pred_region
          %s435 = smul.u32 2, %s24
          %s437 = ssub.s32 256, 256
          %438 = vsyncadd %s428, %s437
          %s439 = smul.addr %s435, 128
          %s440 = scalar_lea.hbm %s4, %s439
          %s441 = sshll.u32 %s431, 4
          %s442 = int_to_ptr.vmem [resolvable:$true] %s441
          %447 = dma.vmem_to_hbm [thread:$0]  %s442, 256, %s440, %s428, 128, 128, 8
        $region52: #{tpu_custom_call.1} parent=35 // pred_fallthru
          _
      $region36: #{tpu_custom_call.1} parent=5 // pred_fallthru
        _
      %p448 = scmp.le.s32.totalorder 2, %s19
      // Predicated region
      $region53: #{tpu_custom_call.1} parent=5 // pred_check
        %p449 = pneg %p448
      $region54: #{tpu_custom_call.1} parent=5 // pred_check_branch
        %451 = sbr.rel (%p449) target = $region56
      $region55: #{tpu_custom_call.1} parent=5 // pred_region
        %s452 = ssub.s32 %s19, 2
        // Predicated region
        $region57: #{tpu_custom_call.1} parent=55 // pred_check
          %p453 = pneg %p142
        $region58: #{tpu_custom_call.1} parent=55 // pred_check_branch
          %455 = sbr.rel (%p453) target = $region60
        $region59: #{tpu_custom_call.1} parent=55 // pred_region
          %s456 = sand.u32 %s127, 1
          %s457 = scalar_lea.sflag [#allocation4], %s456
          %s458 = sand.u32 %s127, 1
          %s459 = smul.addr %s458, 16
          %s460 = scalar_lea.vmem [#allocation8], %s459
          %461 = dma.done %s457, 256
        $region60: #{tpu_custom_call.1} parent=55 // pred_fallthru
          _
      $region56: #{tpu_custom_call.1} parent=5 // pred_fallthru
        _
    $region6: #{tpu_custom_call.1} parent=1 // loop_footer
      %s23 = sadd.s32 1, %s19
    $region7: #{tpu_custom_call.1} parent=1 // loop_footer_branch
      %18 = sbr.rel target = $region3
    $region8: #{tpu_custom_call.1} parent=1 // loop_exit
      _
    %462 = vsyncpa [#allocation3], 1
    %s463 = scalar_lea.sflag [#allocation3], 1
    %464 = vsyncpa %s463, 1
    %465 = vsyncpa [#allocation6], 1
    %s466 = scalar_lea.sflag [#allocation6], 1
    %467 = vsyncpa %s466, 1
    %468 = vsyncpa [#allocation4], 1
    %s469 = scalar_lea.sflag [#allocation4], 1
    %470 = vsyncpa %s469, 1

</llo_original>
